<compile_context>
chip_gen: v7x
topology: tpu7x:2x2x1
jax: 0.10.0
libtpu: 0.0.40
codegen_flags: <defaults>
</compile_context>

<pallas_src>
import functools

import jax
import jax.numpy as jnp
from jax import lax
from jax.experimental import pallas as pl
from jax.experimental.pallas import tpu as pltpu


def _jsd_kernel(l1_ref, l2_ref, out_ref, *, block_rows, n_rows, needs_mask):
    """One batch tile: writes an (8, C) lane-dense partial sum of the fused JSD term."""
    l1 = l1_ref[...].astype(jnp.float32)
    l2 = l2_ref[...].astype(jnp.float32)
    tb, c = l1.shape  # tb == block_rows (multiple of 8), c == full class dim

    if needs_mask:
        # Last tile may extend past the real batch; zero the out-of-range rows so
        # every intermediate stays finite, and force their contribution to 0 below.
        row0 = pl.program_id(0) * block_rows
        rows = row0 + lax.broadcasted_iota(jnp.int32, (tb, c), 0)
        valid = rows < n_rows
        l1 = jnp.where(valid, l1, 0.0)
        l2 = jnp.where(valid, l2, 0.0)

    # Numerically stable softmax / log-softmax along the class (lane) axis.
    mx1 = jnp.max(l1, axis=-1, keepdims=True)
    mx2 = jnp.max(l2, axis=-1, keepdims=True)
    e1 = jnp.exp(l1 - mx1)
    e2 = jnp.exp(l2 - mx2)
    s1 = jnp.sum(e1, axis=-1, keepdims=True)
    s2 = jnp.sum(e2, axis=-1, keepdims=True)
    p1 = e1 * pl.reciprocal(s1, approx=False)
    p2 = e2 * pl.reciprocal(s2, approx=False)
    logp1 = (l1 - mx1) - jnp.log(s1)
    logp2 = (l2 - mx2) - jnp.log(s2)

    m = 0.5 * (p1 + p2)
    logm = jnp.log(m)

    # Fused KL: sum(m*(logm - 0.5*(logp1+logp2))) == 0.5*(KL(m||p1) + KL(m||p2)).
    term = m * (logm - 0.5 * (logp1 + logp2))
    # Match PyTorch kl_div's xlogy handling: a zero target contributes 0 (guards
    # against 0 * (-inf) = NaN when m underflows for extreme logits).
    term = jnp.where(m > 0.0, term, 0.0)
    if needs_mask:
        term = jnp.where(valid, term, 0.0)

    # Partial-reduce over the batch axis only: (tb, C) -> (tb//8, 8, C) -> (8, C).
    # This is plain VPU adds (no full XLU reduction) and the store stays
    # unmasked / lane-dense.  The final sum + /N happens in the wrapper.
    out_ref[...] = jnp.sum(term.reshape(tb // 8, 8, c), axis=0)


def _pick_block_rows(n, c, in_itemsize, *, slab_budget_bytes=32 * 1024 * 1024, cap=1024):
    """Largest batch tile (multiple of 8, <= cap) whose VMEM footprint fits the budget.

    Footprint per row ~= 2 inputs x 2 pipeline buffers at the input dtype plus
    ~8 live f32 element-wise temporaries inside the kernel.  The 32 MiB budget
    (with a 48 MiB scoped limit) leaves headroom even on v7x's 64 MiB VMEM.
    """
    bytes_per_row = c * (8 * 4 + 2 * 2 * in_itemsize)
    tb = slab_budget_bytes // max(bytes_per_row, 1)
    tb = max(8, min(int(tb), cap))
    tb = (tb // 8) * 8
    # Don't exceed the batch (rounded down to a multiple of 8 so the sublane dim
    # of the block stays 8-aligned); partial last tile is handled by masking.
    n_floor8 = max(8, (n // 8) * 8)
    return min(tb, n_floor8)


def jsd(net_1_logits, net_2_logits, *, block_rows=None):
    """Jensen-Shannon divergence between softmax(net_1_logits) and softmax(net_2_logits).

    Inputs: [N, C] logits (class axis last), f32 or bf16.  Returns a scalar float32.
    """
    assert net_1_logits.shape == net_2_logits.shape
    assert net_1_logits.ndim == 2
    n, c = net_1_logits.shape
    in_itemsize = jnp.dtype(net_1_logits.dtype).itemsize

    if block_rows is None:
        block_rows = _pick_block_rows(n, c, in_itemsize)
    assert block_rows >= 8 and block_rows % 8 == 0, "block_rows must be a multiple of 8"
    tb = block_rows

    grid = pl.cdiv(n, tb)
    needs_mask = (grid * tb != n)

    kernel = functools.partial(
        _jsd_kernel, block_rows=tb, n_rows=n, needs_mask=needs_mask
    )

    cost = pl.CostEstimate(
        flops=int(12 * n * c),
        transcendentals=int(3 * n * c),           # 2x exp + 1x log per element
        bytes_accessed=int(2 * n * c * in_itemsize + grid * 8 * c * 4),
    )

    # One lane-dense (8, C) partial per batch tile; disjoint output blocks =>
    # the grid axis is truly parallel (both TCs on v7x).
    partials = pl.pallas_call(
        kernel,
        out_shape=jax.ShapeDtypeStruct((grid * 8, c), jnp.float32),
        grid_spec=pltpu.PrefetchScalarGridSpec(
            num_scalar_prefetch=0,
            grid=(grid,),
            in_specs=[
                pl.BlockSpec((tb, c), lambda i: (i, 0)),
                pl.BlockSpec((tb, c), lambda i: (i, 0)),
            ],
            out_specs=pl.BlockSpec((8, c), lambda i: (i, 0)),
        ),
        compiler_params=pltpu.CompilerParams(
            dimension_semantics=("parallel",),
            vmem_limit_bytes=48 * 1024 * 1024,
        ),
        cost_estimate=cost,
    )(net_1_logits, net_2_logits)

    # batchmean normalization by the ORIGINAL batch size (masked rows contribute 0).
    return (jnp.sum(partials) / jnp.float32(n)).astype(jnp.float32)


def _jsd_reference(l1, l2):
    l1 = l1.astype(jnp.float32)
    l2 = l2.astype(jnp.float32)
    p1 = jax.nn.softmax(l1, axis=1)
    p2 = jax.nn.softmax(l2, axis=1)
    m = 0.5 * (p1 + p2)
    lp1 = jax.nn.log_softmax(l1, axis=1)
    lp2 = jax.nn.log_softmax(l2, axis=1)
    n = l1.shape[0]
    kl1 = jnp.sum(m * (jnp.log(m) - lp1)) / n
    kl2 = jnp.sum(m * (jnp.log(m) - lp2)) / n
    return 0.5 * (kl1 + kl2)


if __name__ == "__main__":
    key = jax.random.PRNGKey(0)
    k1, k2, k3, k4 = jax.random.split(key, 4)

    # Case 1: small aligned shape (single tile, no masking path).
    N, C = 16, 128
    a = jax.random.normal(k1, (N, C), dtype=jnp.float32)
    b = jax.random.normal(k2, (N, C), dtype=jnp.float32)
    out = jax.block_until_ready(jsd(a, b))
    ref = _jsd_reference(a, b)
    assert jnp.allclose(out, ref, rtol=1e-5, atol=1e-6), (out, ref)

    # Case 2: ragged batch exercising the masked partial last tile.
    N2, C2 = 20, 128
    a2 = jax.random.normal(k3, (N2, C2), dtype=jnp.float32)
    b2 = jax.random.normal(k4, (N2, C2), dtype=jnp.float32)
    out2 = jax.block_until_ready(jsd(a2, b2, block_rows=16))
    ref2 = _jsd_reference(a2, b2)
    assert jnp.allclose(out2, ref2, rtol=1e-5, atol=1e-6), (out2, ref2)

    print("KERNEL_OK")
</pallas_src>

<mosaic_0001>
module attributes {stable_mosaic.version = 11 : i64} {
  func.func @_jsd_kernel(%arg0: i32, %arg1: memref<16x128xf32, #tpu.memory_space<vmem>>, %arg2: memref<16x128xf32, #tpu.memory_space<vmem>>, %arg3: memref<8x128xf32, #tpu.memory_space<vmem>>) attributes {dimension_semantics = [#tpu.dimension_semantics<parallel>], iteration_bounds = array<i64: 1>, scalar_prefetch = 0 : i64, scratch_operands = 0 : i64, tpu.core_type = #tpu.core_type<tc>, window_params = [{transform_indices = @transform_0, window_bounds = array<i64: 16, 128>}, {transform_indices = @transform_1, window_bounds = array<i64: 16, 128>}, {transform_indices = @transform_2, window_bounds = array<i64: 8, 128>}]} {
    %c0 = arith.constant 0 : index
    %c0_0 = arith.constant 0 : index
    %0 = vector.load %arg1[%c0, %c0_0] : memref<16x128xf32, #tpu.memory_space<vmem>>, vector<16x128xf32>
    %c0_1 = arith.constant 0 : index
    %c0_2 = arith.constant 0 : index
    %1 = vector.load %arg2[%c0_1, %c0_2] : memref<16x128xf32, #tpu.memory_space<vmem>>, vector<16x128xf32>
    %cst = arith.constant dense<0xFF800000> : vector<16xf32>
    %2 = vector.multi_reduction <maximumf>, %0, %cst [1] : vector<16x128xf32> to vector<16xf32>
    %3 = vector.shape_cast %2 : vector<16xf32> to vector<16x1xf32>
    %cst_3 = arith.constant dense<0xFF800000> : vector<16xf32>
    %4 = vector.multi_reduction <maximumf>, %1, %cst_3 [1] : vector<16x128xf32> to vector<16xf32>
    %5 = vector.shape_cast %4 : vector<16xf32> to vector<16x1xf32>
    %6 = vector.broadcast %3 : vector<16x1xf32> to vector<16x128xf32>
    %7 = arith.subf %0, %6 : vector<16x128xf32>
    %8 = math.exp %7 : vector<16x128xf32>
    %9 = vector.broadcast %5 : vector<16x1xf32> to vector<16x128xf32>
    %10 = arith.subf %1, %9 : vector<16x128xf32>
    %11 = math.exp %10 : vector<16x128xf32>
    %cst_4 = arith.constant dense<0.000000e+00> : vector<16xf32>
    %12 = vector.multi_reduction <add>, %8, %cst_4 [1] : vector<16x128xf32> to vector<16xf32>
    %13 = vector.shape_cast %12 : vector<16xf32> to vector<16x1xf32>
    %cst_5 = arith.constant dense<0.000000e+00> : vector<16xf32>
    %14 = vector.multi_reduction <add>, %11, %cst_5 [1] : vector<16x128xf32> to vector<16xf32>
    %15 = vector.shape_cast %14 : vector<16xf32> to vector<16x1xf32>
    %16 = tpu.reciprocal %13 : vector<16x1xf32> -> vector<16x1xf32>
    %17 = vector.broadcast %16 : vector<16x1xf32> to vector<16x128xf32>
    %18 = arith.mulf %8, %17 : vector<16x128xf32>
    %19 = tpu.reciprocal %15 : vector<16x1xf32> -> vector<16x1xf32>
    %20 = vector.broadcast %19 : vector<16x1xf32> to vector<16x128xf32>
    %21 = arith.mulf %11, %20 : vector<16x128xf32>
    %22 = vector.broadcast %3 : vector<16x1xf32> to vector<16x128xf32>
    %23 = arith.subf %0, %22 : vector<16x128xf32>
    %24 = math.log %13 : vector<16x1xf32>
    %25 = vector.broadcast %24 : vector<16x1xf32> to vector<16x128xf32>
    %26 = arith.subf %23, %25 : vector<16x128xf32>
    %27 = vector.broadcast %5 : vector<16x1xf32> to vector<16x128xf32>
    %28 = arith.subf %1, %27 : vector<16x128xf32>
    %29 = math.log %15 : vector<16x1xf32>
    %30 = vector.broadcast %29 : vector<16x1xf32> to vector<16x128xf32>
    %31 = arith.subf %28, %30 : vector<16x128xf32>
    %32 = arith.addf %18, %21 : vector<16x128xf32>
    %cst_6 = arith.constant 5.000000e-01 : f32
    %33 = vector.broadcast %cst_6 : f32 to vector<16x128xf32>
    %34 = arith.mulf %33, %32 : vector<16x128xf32>
    %35 = math.log %34 : vector<16x128xf32>
    %36 = arith.addf %26, %31 : vector<16x128xf32>
    %cst_7 = arith.constant 5.000000e-01 : f32
    %37 = vector.broadcast %cst_7 : f32 to vector<16x128xf32>
    %38 = arith.mulf %37, %36 : vector<16x128xf32>
    %39 = arith.subf %35, %38 : vector<16x128xf32>
    %40 = arith.mulf %34, %39 : vector<16x128xf32>
    %cst_8 = arith.constant 0.000000e+00 : f32
    %41 = vector.broadcast %cst_8 : f32 to vector<16x128xf32>
    %42 = arith.cmpf ogt, %34, %41 : vector<16x128xf32>
    %cst_9 = arith.constant 0.000000e+00 : f32
    %43 = vector.broadcast %cst_9 : f32 to vector<16x128xf32>
    %44 = arith.select %42, %40, %43 : vector<16x128xi1>, vector<16x128xf32>
    %45 = vector.shape_cast %44 : vector<16x128xf32> to vector<2x8x128xf32>
    %cst_10 = arith.constant dense<0.000000e+00> : vector<8x128xf32>
    %46 = vector.multi_reduction <add>, %45, %cst_10 [0] : vector<2x8x128xf32> to vector<8x128xf32>
    %c0_11 = arith.constant 0 : index
    %c0_12 = arith.constant 0 : index
    %47 = vector.load %arg3[%c0_11, %c0_12] : memref<8x128xf32, #tpu.memory_space<vmem>>, vector<8x128xf32>
    tpu.vector_store %arg3[%c0_11, %c0_12], %46 {strides = array<i32>} : memref<8x128xf32, #tpu.memory_space<vmem>>, vector<8x128xf32>,
    return
  }
  func.func @transform_0(%arg0: i32) -> (i32, i32) {
    %c0_i32 = arith.constant 0 : i32
    %c0_i32_0 = arith.constant 0 : i32
    return %arg0, %c0_i32 : i32, i32
  }
  func.func @transform_1(%arg0: i32) -> (i32, i32) {
    %c0_i32 = arith.constant 0 : i32
    %c0_i32_0 = arith.constant 0 : i32
    return %arg0, %c0_i32 : i32, i32
  }
  func.func @transform_2(%arg0: i32) -> (i32, i32) {
    %c0_i32 = arith.constant 0 : i32
    %c0_i32_0 = arith.constant 0 : i32
    return %arg0, %c0_i32 : i32, i32
  }
}

</mosaic_0001>

<llo_original>
// kernel: tpu_custom_call.1
$region0: #{tpu_custom_call.1}
  #allocation0 [shape = 'u32[]', space=smem, size = 0x4, offset = 0x4, fixed_abs, tag = 'smem constant byte address 0x4 - core index']
  #allocation1 [shape = 'u32[144,128]{1,0:T(1,128)}', space=vmem, size = 0x12000, scoped, tag = 'internal scratch']
  %s0 = inlined_call_operand.hbm [shape: f32[16,128], index: 0, kind: input, shape index: {}]
  %s1 = inlined_call_operand.hbm [shape: f32[16,128], index: 1, kind: input, shape index: {}]
  %s2 = inlined_call_operand.hbm [shape: f32[8,128], index: 2, kind: output, shape index: {}]
  %s3 = sld [smem:[#allocation0]]
  $region26: #{tpu_custom_call.1} parent=0
    _
  %s5 = ssub.s32 1, %s3
  %s6 = scalar_select 0, %s5, %s3
  $region1: #{tpu_custom_call.1} parent=0
    #allocation2 [shape = 'u8[8192]{0}', space=vmem, size = 0x2000, scoped, tag = 'input window, operand 0, single buffered']
    #allocation3 [shape = 's32[1]{0}', space=sflag, size = 0x4, scoped, tag = 'scoped memory for tpu_custom_call.1']
    #allocation4 [shape = 's32[1]{0}', space=sflag, size = 0x4, scoped, tag = 'scoped memory for tpu_custom_call.1']
    #allocation5 [shape = 'u8[8192]{0}', space=vmem, size = 0x2000, scoped, tag = 'input window, operand 1, single buffered']
    #allocation6 [shape = 's32[1]{0}', space=sflag, size = 0x4, scoped, tag = 'scoped memory for tpu_custom_call.1']
    #allocation7 [shape = 'u8[4096]{0}', space=vmem, size = 0x1000, scoped, tag = 'output window, operand 0, single buffered']
    %7 = vsyncpa [#allocation3], 0
    %8 = vsyncpa [#allocation6], 0
    %9 = vsyncpa [#allocation4], 0
    // Predicated region
    $region2: #{tpu_custom_call.1} parent=1 // pred_check
      _
    $region3: #{tpu_custom_call.1} parent=1 // pred_check_branch
      %11 = sbr.rel (0) target = $region5
    $region4: #{tpu_custom_call.1} parent=1 // pred_region
      %s13 = ssub.s32 256, 256
      %14 = vsyncadd [#allocation3], %s13
      %s15 = sshll.u32 [#allocation2], 4
      %s16 = int_to_ptr.vmem [resolvable:$true] %s15
      %21 = dma.hbm_to_vmem [thread:$0]  %s0, 256, %s16, [#allocation3], 128, 128, 8
    $region5: #{tpu_custom_call.1} parent=1 // pred_fallthru
      _
    // Predicated region
    $region6: #{tpu_custom_call.1} parent=1 // pred_check
      _
    $region7: #{tpu_custom_call.1} parent=1 // pred_check_branch
      %23 = sbr.rel (0) target = $region9
    $region8: #{tpu_custom_call.1} parent=1 // pred_region
      %s25 = ssub.s32 256, 256
      %26 = vsyncadd [#allocation6], %s25
      %s27 = sshll.u32 [#allocation5], 4
      %s28 = int_to_ptr.vmem [resolvable:$true] %s27
      %33 = dma.hbm_to_vmem [thread:$0]  %s1, 256, %s28, [#allocation6], 128, 128, 8
    $region9: #{tpu_custom_call.1} parent=1 // pred_fallthru
      _
    // Predicated region
    $region10: #{tpu_custom_call.1} parent=1 // pred_check
      _
    $region11: #{tpu_custom_call.1} parent=1 // pred_check_branch
      %35 = sbr.rel (0) target = $region13
    $region12: #{tpu_custom_call.1} parent=1 // pred_region
      %36 = dma.done [#allocation3], 256
    $region13: #{tpu_custom_call.1} parent=1 // pred_fallthru
      _
    // Predicated region
    $region14: #{tpu_custom_call.1} parent=1 // pred_check
      _
    $region15: #{tpu_custom_call.1} parent=1 // pred_check_branch
      %38 = sbr.rel (0) target = $region17
    $region16: #{tpu_custom_call.1} parent=1 // pred_region
      %39 = dma.done [#allocation6], 256
    $region17: #{tpu_custom_call.1} parent=1 // pred_fallthru
      _
    %v40 = vld [vmem:[#allocation2] sm:$0xff]
    %v41 = vld [vmem:[#allocation2 + $0x8] sm:$0xff]
    %v42 = vld [vmem:[#allocation5] sm:$0xff]
    %v43 = vld [vmem:[#allocation5 + $0x8] sm:$0xff]
    %44 = vmax.xlane.f32.xlu0 %v40
    %v45 = vpop.xlane.xlu0 %44
    %46 = vmax.xlane.f32.xlu0 %v41
    %v47 = vpop.xlane.xlu0 %46
    %48 = vmax.xlane.f32.xlu0 %v42
    %v49 = vpop.xlane.xlu0 %48
    %50 = vmax.xlane.f32.xlu0 %v43
    %v51 = vpop.xlane.xlu0 %50
    %v52 = vsub.f32 %v40, %v45
    %v53 = vsub.f32 %v41, %v47
    %v54 = vmul.f32 %v52, 1.442695
    %v55 = vpow.pop %v54
    %v56 = vmul.f32 %v53, 1.442695
    %v57 = vpow.pop %v56
    %v58 = vsub.f32 %v42, %v49
    %v59 = vsub.f32 %v43, %v51
    %v60 = vmul.f32 %v58, 1.442695
    %v61 = vpow.pop %v60
    %v62 = vmul.f32 %v59, 1.442695
    %v63 = vpow.pop %v62
    %64 = vadd.xlane.f32.xlu0 %v55
    %v65 = vpop.xlane.xlu0 %64
    %66 = vadd.xlane.f32.xlu0 %v57
    %v67 = vpop.xlane.xlu0 %66
    %68 = vadd.xlane.f32.xlu0 %v61
    %v69 = vpop.xlane.xlu0 %68
    %70 = vadd.xlane.f32.xlu0 %v63
    %v71 = vpop.xlane.xlu0 %70
    %v72 = vrcp.pop %v65
    %v73 = vrcp.pop %v67
    %v74 = vmul.f32 %v55, %v72
    %v75 = vmul.f32 %v57, %v73
    %v76 = vrcp.pop %v69
    %v77 = vrcp.pop %v71
    %v78 = vmul.f32 %v61, %v76
    %v79 = vmul.f32 %v63, %v77
    %v80 = vlog2.pop %v65
    %v81 = vmul.f32 %v80, 0.6931472
    %v82 = vlog2.pop %v67
    %v83 = vmul.f32 %v82, 0.6931472
    %v84 = vsub.f32 %v52, %v81
    %v85 = vsub.f32 %v53, %v83
    %v86 = vlog2.pop %v69
    %v87 = vmul.f32 %v86, 0.6931472
    %v88 = vlog2.pop %v71
    %v89 = vmul.f32 %v88, 0.6931472
    %v90 = vsub.f32 %v58, %v87
    %v91 = vsub.f32 %v59, %v89
    %v92 = vadd.f32 %v74, %v78
    %v93 = vadd.f32 %v75, %v79
    %v94 = vmul.f32 %v92, 0.5
    %v95 = vmul.f32 %v93, 0.5
    %v96 = vlog2.pop %v94
    %v97 = vmul.f32 %v96, 0.6931472
    %v98 = vlog2.pop %v95
    %v99 = vmul.f32 %v98, 0.6931472
    %v100 = vadd.f32 %v84, %v90
    %v101 = vadd.f32 %v85, %v91
    %v102 = vmul.f32 %v100, 0.5
    %v103 = vmul.f32 %v101, 0.5
    %v104 = vsub.f32 %v97, %v102
    %v105 = vsub.f32 %v99, %v103
    %v106 = vmul.f32 %v94, %v104
    %v107 = vmul.f32 %v95, %v105
    %vm108 = vcmp.gt.f32.partialorder %v94, 0.0
    %vm109 = vcmp.gt.f32.partialorder %v95, 0.0
    %v110 = vsel %vm108, %v106, 0.0
    %v111 = vsel %vm109, %v107, 0.0
    %v112 = vadd.f32 %v110, %v111
    %113 = vst [vmem:[#allocation7] sm:$0xff] %v112
    // Predicated region
    $region18: #{tpu_custom_call.1} parent=1 // pred_check
      _
    $region19: #{tpu_custom_call.1} parent=1 // pred_check_branch
      %115 = sbr.rel (0) target = $region21
    $region20: #{tpu_custom_call.1} parent=1 // pred_region
      %s117 = ssub.s32 128, 128
      %118 = vsyncadd [#allocation4], %s117
      %s120 = sshll.u32 [#allocation7], 4
      %s121 = int_to_ptr.vmem [resolvable:$true] %s120
      %123 = dma.vmem_to_hbm [thread:$0]  %s121, 128, %s2, [#allocation4]
    $region21: #{tpu_custom_call.1} parent=1 // pred_fallthru
      _
    // Predicated region
    $region22: #{tpu_custom_call.1} parent=1 // pred_check
      _
    $region23: #{tpu_custom_call.1} parent=1 // pred_check_branch
      %125 = sbr.rel (0) target = $region25
    $region24: #{tpu_custom_call.1} parent=1 // pred_region
      %126 = dma.done [#allocation4], 128
    $region25: #{tpu_custom_call.1} parent=1 // pred_fallthru
      _
    %127 = vsyncpa [#allocation3], 1
    %128 = vsyncpa [#allocation6], 1
    %129 = vsyncpa [#allocation4], 1

</llo_original>
